<compile_context>
chip_gen: v5e
topology: v5e:2x2
jax: 0.10.0
libtpu: 0.0.40
codegen_flags: <defaults>
</compile_context>

<pallas_src>
import functools

import jax
import jax.numpy as jnp
from jax.experimental import pallas as pl
from jax.experimental.pallas import tpu as pltpu


def _round_up(x: int, m: int) -> int:
    return ((x + m - 1) // m) * m


def net_kernel(x_ref, w1t_ref, b1_ref, w2t_ref, b2_ref, o_ref):
    # x_ref  : (TB, 17)  batch tile, natural row-major layout
    # w1t_ref: (17, 10)  = W1.T (pre-transposed in the wrapper)
    # b1_ref : (1, 10)
    # w2t_ref: (10, 1)   = W2.T
    # b2_ref : (1, 1)
    # o_ref  : (TB, 1)
    x = x_ref[...]
    h = jnp.dot(x, w1t_ref[...], preferred_element_type=jnp.float32)   # (TB, 10)
    h = jnp.tanh(h + b1_ref[...])                                      # sublane-broadcast bias
    # nn.Dropout(0.5) in the reference forward is constructed but never applied -> identity.
    y = jnp.dot(h, w2t_ref[...], preferred_element_type=jnp.float32)   # (TB, 1)
    o_ref[...] = y + b2_ref[...]


@functools.partial(jax.jit, static_argnames=("tb",))
def net_forward(x, w1, b1, w2, b2, *, tb: int = 2048):
    """x: (B, 17); w1: (10, 17); b1: (10,); w2: (1, 10); b2: (1,). Returns (B, 1) f32."""
    B, f_in = x.shape
    hidden = w1.shape[0]

    # Batch tile: multiple of 8 (sublane granule), capped at the (rounded) batch.
    tb = max(8, min(_round_up(tb, 8), _round_up(B, 8)))
    grid = (pl.cdiv(B, tb),)

    # Tiny host-side parameter reshapes (negligible; x itself is untouched).
    w1t = w1.T.astype(jnp.float32)                       # (17, 10)
    b1r = b1.reshape(1, hidden).astype(jnp.float32)      # (1, 10)
    w2t = w2.T.astype(jnp.float32)                       # (10, 1)
    b2r = b2.reshape(1, 1).astype(jnp.float32)           # (1, 1)

    out = pl.pallas_call(
        net_kernel,
        out_shape=jax.ShapeDtypeStruct((B, 1), jnp.float32),
        grid_spec=pltpu.PrefetchScalarGridSpec(
            num_scalar_prefetch=0,
            grid=grid,
            in_specs=[
                pl.BlockSpec((tb, f_in), lambda i: (i, 0)),      # x tiles stream through
                pl.BlockSpec((f_in, hidden), lambda i: (0, 0)),  # weights stay VMEM-resident
                pl.BlockSpec((1, hidden), lambda i: (0, 0)),
                pl.BlockSpec((hidden, 1), lambda i: (0, 0)),
                pl.BlockSpec((1, 1), lambda i: (0, 0)),
            ],
            out_specs=pl.BlockSpec((tb, 1), lambda i: (i, 0)),
        ),
        compiler_params=pltpu.CompilerParams(
            dimension_semantics=("parallel",),   # megacore sharding on v7x
        ),
    )(x.astype(jnp.float32), w1t, b1r, w2t, b2r)

    return out


def init_params(key):
    # Deterministic init mimicking PyTorch's default Linear init:
    # U(-1/sqrt(fan_in), 1/sqrt(fan_in)); weights kept in PyTorch (out, in) layout.
    k1, k2, k3, k4 = jax.random.split(key, 4)
    bound1 = 1.0 / jnp.sqrt(17.0)
    bound2 = 1.0 / jnp.sqrt(10.0)
    w1 = jax.random.uniform(k1, (10, 17), jnp.float32, -bound1, bound1)
    b1 = jax.random.uniform(k2, (10,), jnp.float32, -bound1, bound1)
    w2 = jax.random.uniform(k3, (1, 10), jnp.float32, -bound2, bound2)
    b2 = jax.random.uniform(k4, (1,), jnp.float32, -bound2, bound2)
    return w1, b1, w2, b2


if __name__ == "__main__":
    key = jax.random.PRNGKey(0)
    kx, kp = jax.random.split(key)

    B = 8
    x = jax.random.normal(kx, (B, 17), jnp.float32)
    w1, b1, w2, b2 = init_params(kp)

    out = net_forward(x, w1, b1, w2, b2)
    out = jax.block_until_ready(out)

    # Pure-JAX reference check of the same forward pass (PyTorch layout).
    ref = jnp.tanh(x @ w1.T + b1) @ w2.T + b2
    assert out.shape == (B, 1)
    assert jnp.allclose(out, ref, atol=1e-5, rtol=1e-5)

    print("KERNEL_OK")
</pallas_src>

<mosaic_0001>
module attributes {stable_mosaic.version = 11 : i64} {
  func.func @net_kernel(%arg0: i32, %arg1: memref<8x17xf32, #tpu.memory_space<vmem>>, %arg2: memref<17x10xf32, #tpu.memory_space<vmem>>, %arg3: memref<1x10xf32, #tpu.memory_space<vmem>>, %arg4: memref<10x1xf32, #tpu.memory_space<vmem>>, %arg5: memref<1x1xf32, #tpu.memory_space<vmem>>, %arg6: memref<8x1xf32, #tpu.memory_space<vmem>>) attributes {dimension_semantics = [#tpu.dimension_semantics<parallel>], iteration_bounds = array<i64: 1>, scalar_prefetch = 0 : i64, scratch_operands = 0 : i64, tpu.core_type = #tpu.core_type<tc>, window_params = [{transform_indices = @transform_0, window_bounds = array<i64: 8, 17>}, {pipeline_mode = #tpu.pipeline_mode<synchronous>, transform_indices = @transform_1, window_bounds = array<i64: 17, 10>}, {pipeline_mode = #tpu.pipeline_mode<synchronous>, transform_indices = @transform_2, window_bounds = array<i64: 1, 10>}, {pipeline_mode = #tpu.pipeline_mode<synchronous>, transform_indices = @transform_3, window_bounds = array<i64: 10, 1>}, {pipeline_mode = #tpu.pipeline_mode<synchronous>, transform_indices = @transform_4, window_bounds = array<i64: 1, 1>}, {transform_indices = @transform_5, window_bounds = array<i64: 8, 1>}]} {
    %c0 = arith.constant 0 : index
    %c0_0 = arith.constant 0 : index
    %0 = vector.load %arg1[%c0, %c0_0] : memref<8x17xf32, #tpu.memory_space<vmem>>, vector<8x17xf32>
    %c0_1 = arith.constant 0 : index
    %c0_2 = arith.constant 0 : index
    %1 = vector.load %arg2[%c0_1, %c0_2] : memref<17x10xf32, #tpu.memory_space<vmem>>, vector<17x10xf32>
    %cst = arith.constant dense<0.000000e+00> : vector<8x10xf32>
    %2 = tpu.matmul %0, %1, %cst {dimension_numbers = #tpu.dot_dimension_numbers<[1], [0], [0], [1], [0, 0, 1, 1], [], []>} : vector<8x17xf32>, vector<17x10xf32>, vector<8x10xf32> -> vector<8x10xf32>
    %c0_3 = arith.constant 0 : index
    %c0_4 = arith.constant 0 : index
    %3 = vector.load %arg3[%c0_3, %c0_4] : memref<1x10xf32, #tpu.memory_space<vmem>>, vector<1x10xf32>
    %4 = vector.broadcast %3 : vector<1x10xf32> to vector<8x10xf32>
    %5 = arith.addf %2, %4 : vector<8x10xf32>
    %6 = math.tanh %5 : vector<8x10xf32>
    %c0_5 = arith.constant 0 : index
    %c0_6 = arith.constant 0 : index
    %7 = vector.load %arg4[%c0_5, %c0_6] : memref<10x1xf32, #tpu.memory_space<vmem>>, vector<10x1xf32>
    %cst_7 = arith.constant dense<0.000000e+00> : vector<8x1xf32>
    %8 = tpu.matmul %6, %7, %cst_7 {dimension_numbers = #tpu.dot_dimension_numbers<[1], [0], [0], [1], [0, 0, 1, 1], [], []>} : vector<8x10xf32>, vector<10x1xf32>, vector<8x1xf32> -> vector<8x1xf32>
    %c0_8 = arith.constant 0 : index
    %c0_9 = arith.constant 0 : index
    %9 = vector.load %arg5[%c0_8, %c0_9] : memref<1x1xf32, #tpu.memory_space<vmem>>, vector<1x1xf32>
    %10 = vector.broadcast %9 : vector<1x1xf32> to vector<8x1xf32>
    %11 = arith.addf %8, %10 : vector<8x1xf32>
    %c0_10 = arith.constant 0 : index
    %c0_11 = arith.constant 0 : index
    %12 = vector.load %arg6[%c0_10, %c0_11] : memref<8x1xf32, #tpu.memory_space<vmem>>, vector<8x1xf32>
    tpu.vector_store %arg6[%c0_10, %c0_11], %11 {strides = array<i32>} : memref<8x1xf32, #tpu.memory_space<vmem>>, vector<8x1xf32>,
    return
  }
  func.func @transform_0(%arg0: i32) -> (i32, i32) {
    %c0_i32 = arith.constant 0 : i32
    %c0_i32_0 = arith.constant 0 : i32
    return %arg0, %c0_i32 : i32, i32
  }
  func.func @transform_1(%arg0: i32) -> (i32, i32) {
    %c0_i32 = arith.constant 0 : i32
    %c0_i32_0 = arith.constant 0 : i32
    %c0_i32_1 = arith.constant 0 : i32
    return %c0_i32, %c0_i32_0 : i32, i32
  }
  func.func @transform_2(%arg0: i32) -> (i32, i32) {
    %c0_i32 = arith.constant 0 : i32
    %c0_i32_0 = arith.constant 0 : i32
    %c0_i32_1 = arith.constant 0 : i32
    return %c0_i32, %c0_i32_0 : i32, i32
  }
  func.func @transform_3(%arg0: i32) -> (i32, i32) {
    %c0_i32 = arith.constant 0 : i32
    %c0_i32_0 = arith.constant 0 : i32
    %c0_i32_1 = arith.constant 0 : i32
    return %c0_i32, %c0_i32_0 : i32, i32
  }
  func.func @transform_4(%arg0: i32) -> (i32, i32) {
    %c0_i32 = arith.constant 0 : i32
    %c0_i32_0 = arith.constant 0 : i32
    %c0_i32_1 = arith.constant 0 : i32
    return %c0_i32, %c0_i32_0 : i32, i32
  }
  func.func @transform_5(%arg0: i32) -> (i32, i32) {
    %c0_i32 = arith.constant 0 : i32
    %c0_i32_0 = arith.constant 0 : i32
    return %arg0, %c0_i32 : i32, i32
  }
}

</mosaic_0001>

<llo_original>
// kernel: net_forward.1
$region0: #{net_forward.1}
  #allocation0 [shape = 'u32[]', space=smem, size = 0x4, offset = 0x4, fixed_abs, tag = 'smem constant byte address 0x4 - core index']
  #allocation1 [shape = 'u32[72,128]{1,0:T(1,128)}', space=vmem, size = 0x9000, scoped, tag = 'internal scratch']
  #allocation2 [shape = 'f32[1,1]{1,0:T(1,128)S(1)}', space=vmem, size = 0x200, scoped, tag = 'scoped memory for net_forward.1']
  %s0 = inlined_call_operand.vmem [shape: f32[8,17], index: 0, kind: input, shape index: {}]
  %s1 = inlined_call_operand.vmem [shape: f32[17,10], index: 1, kind: input, shape index: {}]
  %s2 = inlined_call_operand.vmem [shape: f32[1,10], index: 2, kind: input, shape index: {}]
  %s3 = inlined_call_operand.vmem [shape: f32[10,1], index: 3, kind: input, shape index: {}]
  %s4 = inlined_call_operand.<no memory space> [shape: f32[1,1], index: 4, kind: input, shape index: {}]
  %s5 = inlined_call_operand.vmem [shape: f32[8,1], index: 5, kind: output, shape index: {}]
  %s6 = sld [smem:[#allocation0]]
  $region30: #{net_forward.1} parent=0
    _
  %s8 = ssub.s32 1, %s6
  %s9 = scalar_select 0, %s8, %s6
  %v10 = vstv %s4
  %11 = vst [vmem:[#allocation2] sm:$0x1] %v10
  // Predicated region
  $region2: #{net_forward.1} parent=0 // pred_check
    _
  $region3: #{net_forward.1} parent=0 // pred_check_branch
    %13 = sbr.rel (0) target = $region5
  $region4: #{net_forward.1} parent=0 // pred_region
    _
  $region5: #{net_forward.1} parent=0 // pred_fallthru
    _
  // Predicated region
  $region6: #{net_forward.1} parent=0 // pred_check
    _
  $region7: #{net_forward.1} parent=0 // pred_check_branch
    %15 = sbr.rel (0) target = $region9
  $region8: #{net_forward.1} parent=0 // pred_region
    _
  $region9: #{net_forward.1} parent=0 // pred_fallthru
    _
  // Predicated region
  $region10: #{net_forward.1} parent=0 // pred_check
    _
  $region11: #{net_forward.1} parent=0 // pred_check_branch
    %17 = sbr.rel (0) target = $region13
  $region12: #{net_forward.1} parent=0 // pred_region
    _
  $region13: #{net_forward.1} parent=0 // pred_fallthru
    _
  // Predicated region
  $region14: #{net_forward.1} parent=0 // pred_check
    _
  $region15: #{net_forward.1} parent=0 // pred_check_branch
    %19 = sbr.rel (0) target = $region17
  $region16: #{net_forward.1} parent=0 // pred_region
    _
  $region17: #{net_forward.1} parent=0 // pred_fallthru
    _
  // Predicated region
  $region18: #{net_forward.1} parent=0 // pred_check
    _
  $region19: #{net_forward.1} parent=0 // pred_check_branch
    %21 = sbr.rel (0) target = $region21
  $region20: #{net_forward.1} parent=0 // pred_region
    _
  $region21: #{net_forward.1} parent=0 // pred_fallthru
    _
  %v22 = vld [vmem:[%s0] sm:$0xff]
  %v23 = vld [vmem:[%s1] sm:$0xff]
  %v24 = vld [vmem:[%s1 + $0x8] sm:$0xff]
  %v25 = vld [vmem:[%s1 + $0x10] sm:$0x1]
  %v26 = vld [vmem:[%s2] sm:$0x1]
  %v28 = vperm.slane %v26, 0
  %vm30 = vcmask 138240
  %v32 = vsel %vm30, %v22, 0
  %vm34 = vcmask 1040384
  %v36 = vsel %vm34, %v25, 0
  %38 = vmatpush.msra.mxu0 0.0
  %39 = vmatpush.msra.mxu0 0.0
  %40 = vmatpush.msra.mxu0 0.0
  %41 = vmatpush.msra.mxu0 0.0
  %42 = vmatpush.msra.mxu0 0.0
  %43 = vmatpush.msra.mxu0 0.0
  %44 = vmatpush.msra.mxu0 0.0
  %45 = vmatpush.msra.mxu0 0.0
  %46 = vmatpush.msra.mxu0 0.0
  %47 = vmatpush.msra.mxu0 0.0
  %48 = vmatpush.msra.mxu0 0.0
  %49 = vmatpush.msra.mxu0 0.0
  %50 = vmatpush.msra.mxu0 0.0
  %51 = vmatpush.msra.mxu0 %v36
  %52 = vmatpush.msra.mxu0 %v24
  %53 = vmatpush.msra.mxu0 %v23
  %54 = vmatmul.f32.gmra.mxu0 %v32
  %v55 = vpop.f32.mrf.mxu0
  %v56 = vadd.f32 %v28, %v55
  %57 = vdwg.mxu0
  %v58 = vtanh.pop %v56
  %v59 = vld [vmem:[%s3] sm:$0xff]
  %v60 = vld [vmem:[%s3 + $0x8] sm:$0x3]
  %v61 = vld [vmem:[#allocation2] sm:$0x1]
  %v63 = vperm.slane %v61, 0
  %vm65 = vcmask 80896
  %v67 = vsel %vm65, %v58, 0
  %vm69 = vcmask 1041408
  %v71 = vsel %vm69, %v60, 0
  %73 = vmatpush.msra.mxu0 0.0
  %74 = vmatpush.msra.mxu0 0.0
  %75 = vmatpush.msra.mxu0 0.0
  %76 = vmatpush.msra.mxu0 0.0
  %77 = vmatpush.msra.mxu0 0.0
  %78 = vmatpush.msra.mxu0 0.0
  %79 = vmatpush.msra.mxu0 0.0
  %80 = vmatpush.msra.mxu0 0.0
  %81 = vmatpush.msra.mxu0 0.0
  %82 = vmatpush.msra.mxu0 0.0
  %83 = vmatpush.msra.mxu0 0.0
  %84 = vmatpush.msra.mxu0 0.0
  %85 = vmatpush.msra.mxu0 0.0
  %86 = vmatpush.msra.mxu0 0.0
  %87 = vmatpush.msra.mxu0 %v71
  %88 = vmatpush.msra.mxu0 %v59
  %89 = vmatmul.f32.gmra.mxu0 %v67
  %v90 = vpop.f32.mrf.mxu0
  %v91 = vadd.f32 %v63, %v90
  %92 = vdwg.mxu0
  %vm93 = vcmask 7168
  %94 = vst.msk [vmem:[%s5] sm:$0xff] %vm93, %v91
  // Predicated region
  $region22: #{net_forward.1} parent=0 // pred_check
    _
  $region23: #{net_forward.1} parent=0 // pred_check_branch
    %96 = sbr.rel (0) target = $region25
  $region24: #{net_forward.1} parent=0 // pred_region
    _
  $region25: #{net_forward.1} parent=0 // pred_fallthru
    _
  // Predicated region
  $region26: #{net_forward.1} parent=0 // pred_check
    _
  $region27: #{net_forward.1} parent=0 // pred_check_branch
    %98 = sbr.rel (0) target = $region29
  $region28: #{net_forward.1} parent=0 // pred_region
    _
  $region29: #{net_forward.1} parent=0 // pred_fallthru
    _

</llo_original>
